<compile_context>
chip_gen: v7x
topology: tpu7x:2x2x1
jax: 0.10.0
libtpu: 0.0.40
codegen_flags: <defaults>
</compile_context>

<pallas_src>
import math

import numpy as np
import jax
import jax.numpy as jnp
from jax.experimental import pallas as pl
from jax.experimental.pallas import tpu as pltpu


# ----------------------------------------------------------------------------
# Glue: PyTorch-exact bilinear (align_corners=False) weight matrices
# ----------------------------------------------------------------------------
def _bilinear_weight_matrix(out_size: int, in_size: int) -> np.ndarray:
    """Row i gives the interpolation weights over the input axis for output i,
    matching torch F.interpolate(mode='bilinear', align_corners=False)."""
    scale = in_size / out_size
    W = np.zeros((out_size, in_size), dtype=np.float32)
    for i in range(out_size):
        src = (i + 0.5) * scale - 0.5
        if src < 0.0:
            src = 0.0
        i0 = int(np.floor(src))
        if i0 > in_size - 1:
            i0 = in_size - 1
        p = 1 if i0 < in_size - 1 else 0
        lam1 = src - i0
        lam0 = 1.0 - lam1
        W[i, i0] += lam0
        W[i, i0 + p] += lam1
    return W


def _round_up(v: int, m: int) -> int:
    return ((v + m - 1) // m) * m


# ----------------------------------------------------------------------------
# Kernels (closures over static tile sizes)
# ----------------------------------------------------------------------------
def _make_wy_first_kernel(bc: int, oh: int):
    # x_ref  : (Bc, Hc, Wc)
    # wy_ref : (OH, Hc)
    # wxt_ref: (Wc, OWp)          pre-transposed, lane-dense padded
    # o_ref  : (Bc*OH, OWp)       channel-stacked, lane-dense
    # t_ref  : (Bc*OH, Wc) f32    VMEM scratch
    def kernel(x_ref, wy_ref, wxt_ref, o_ref, t_ref):
        wy = wy_ref[...]
        for b in range(bc):  # small static unroll: (OH,Hc)x(Hc,Wc) per channel
            t_ref[b * oh:(b + 1) * oh, :] = jnp.dot(
                wy, x_ref[b], preferred_element_type=jnp.float32)
        # single big-M matmul: (Bc*OH, Wc) x (Wc, OWp) -> lane-dense stores
        o_ref[...] = jnp.dot(
            t_ref[...], wxt_ref[...],
            preferred_element_type=jnp.float32).astype(o_ref.dtype)
    return kernel


def _make_wx_first_kernel(bc: int, hc: int):
    # x_ref  : (Bc*Hc, Wc)        channel-stacked
    # wy_ref : (OH, Hc)
    # wxt_ref: (Wc, OWp)
    # o_ref  : (Bc, OH, OWp)
    # t_ref  : (Bc*Hc, OWp) f32   VMEM scratch
    def kernel(x_ref, wy_ref, wxt_ref, o_ref, t_ref):
        # single big-M matmul first: (Bc*Hc, Wc) x (Wc, OWp)
        t_ref[...] = jnp.dot(
            x_ref[...], wxt_ref[...], preferred_element_type=jnp.float32)
        wy = wy_ref[...]
        for b in range(bc):
            o_ref[b] = jnp.dot(
                wy, t_ref[b * hc:(b + 1) * hc, :],
                preferred_element_type=jnp.float32).astype(o_ref.dtype)
    return kernel


# ----------------------------------------------------------------------------
# Wrapper: channel batching, padding, BlockSpecs
# ----------------------------------------------------------------------------
def _choose_block_channels(nc: int, hc: int, wc: int, oh: int, owp: int) -> int:
    """Largest channel batch that keeps the VMEM working set conservative
    (fits v7x's 64 MiB VMEM with double-buffering), while leaving >=2 grid
    steps when possible so v7x's 2 TensorCores both get work."""
    bytes_f32 = 4
    per_ch = (2 * hc * wc + 2 * oh * owp + max(oh * wc, hc * owp)) * bytes_f32
    budget = 24 * 1024 * 1024
    bc = max(1, min(nc, budget // max(per_ch, 1)))
    if nc >= 2:
        bc = min(bc, max(1, nc // 2))
    return int(min(bc, 64))


def _bev_resize(xc, wy, wxt, ow, *, compute_dtype=jnp.float32, force_order=None):
    """xc: (N, C, Hc, Wc) cropped BEV.  wy: (OH, Hc).  wxt: (Wc, OWp).
    Returns (N, C, OH, OW) in xc.dtype."""
    N, C, Hc, Wc = xc.shape
    OH = wy.shape[0]
    OWp = wxt.shape[1]
    out_dtype = xc.dtype
    nc = N * C

    # trace-time contraction-order choice (per-channel MACs, incl. lane padding)
    cost_wy_first = OH * Hc * Wc + OH * Wc * OWp
    cost_wx_first = Hc * Wc * OWp + OH * Hc * OWp
    order = force_order or ("wy_first" if cost_wy_first <= cost_wx_first
                            else "wx_first")

    # channel batch; the stacked (2D) side's second-to-last block dim must be a
    # multiple of 8 (sublane tiling) unless it spans the whole array.
    inner = OH if order == "wy_first" else Hc
    mult = 8 // math.gcd(inner, 8)
    bc = _choose_block_channels(nc, Hc, Wc, OH, OWp)
    bc = max(mult, (bc // mult) * mult)
    gtot = _round_up(nc, bc)
    grid = gtot // bc

    xf = xc.reshape(nc, Hc, Wc)
    if gtot > nc:
        xf = jnp.pad(xf, ((0, gtot - nc), (0, 0), (0, 0)))
    xf = xf.astype(compute_dtype)
    wy_c = wy.astype(compute_dtype)
    wxt_c = wxt.astype(compute_dtype)

    cparams = pltpu.CompilerParams(
        dimension_semantics=("parallel",),
        vmem_limit_bytes=48 * 1024 * 1024,
    )

    if order == "wy_first":
        out2 = pl.pallas_call(
            _make_wy_first_kernel(bc, OH),
            out_shape=jax.ShapeDtypeStruct((gtot * OH, OWp), out_dtype),
            grid=(grid,),
            in_specs=[
                pl.BlockSpec((bc, Hc, Wc), lambda g: (g, 0, 0)),
                pl.BlockSpec((OH, Hc), lambda g: (0, 0)),
                pl.BlockSpec((Wc, OWp), lambda g: (0, 0)),
            ],
            out_specs=pl.BlockSpec((bc * OH, OWp), lambda g: (g, 0)),
            scratch_shapes=[pltpu.VMEM((bc * OH, Wc), jnp.float32)],
            compiler_params=cparams,
        )(xf, wy_c, wxt_c)
        out = out2.reshape(gtot, OH, OWp)
    else:  # wx_first
        x2 = xf.reshape(gtot * Hc, Wc)
        out = pl.pallas_call(
            _make_wx_first_kernel(bc, Hc),
            out_shape=jax.ShapeDtypeStruct((gtot, OH, OWp), out_dtype),
            grid=(grid,),
            in_specs=[
                pl.BlockSpec((bc * Hc, Wc), lambda g: (g, 0)),
                pl.BlockSpec((OH, Hc), lambda g: (0, 0)),
                pl.BlockSpec((Wc, OWp), lambda g: (0, 0)),
            ],
            out_specs=pl.BlockSpec((bc, OH, OWp), lambda g: (g, 0, 0)),
            scratch_shapes=[pltpu.VMEM((bc * Hc, OWp), jnp.float32)],
            compiler_params=cparams,
        )(x2, wy_c, wxt_c)

    # drop channel padding and lane padding, restore NCHW
    out = out[:nc, :, :ow].reshape(N, C, OH, ow)
    return out


# ----------------------------------------------------------------------------
# Module equivalent
# ----------------------------------------------------------------------------
class BEVGridTransform:
    def __init__(self, *, input_scope, output_scope, prescale_factor: float = 1,
                 compute_dtype=jnp.float32):
        self.input_scope = input_scope
        self.output_scope = output_scope
        xbound = output_scope[0]
        ybound = output_scope[1]
        patch_h = ybound[1] - ybound[0]
        patch_w = xbound[1] - xbound[0]
        canvas_h = int(patch_h / ybound[2])
        canvas_w = int(patch_w / xbound[2])
        self.offset_x_min = int((xbound[0] - input_scope[0][0]) / input_scope[0][2])
        self.offset_x_max = int((xbound[1] - input_scope[0][0]) / input_scope[0][2])
        self.offset_y_min = int((ybound[0] - input_scope[1][0]) / input_scope[1][2])
        self.offset_y_max = int((ybound[1] - input_scope[1][0]) / input_scope[1][2])
        self.canvas_size = (canvas_h, canvas_w)
        self.prescale_factor = prescale_factor  # unused in forward (matches PyTorch)
        # compute_dtype=jnp.bfloat16 halves HBM traffic on this mem-bound op
        # (accumulation stays f32); default f32 for bit-faithful PyTorch parity.
        self.compute_dtype = compute_dtype

        # Build interpolation matrices once (review: hoist out of __call__).
        self._Hc = self.offset_y_max - self.offset_y_min
        self._Wc = self.offset_x_max - self.offset_x_min
        OH, OW = self.canvas_size
        OWp = OW if OW % 128 == 0 else _round_up(OW, 128)  # lane-dense output width
        wy = _bilinear_weight_matrix(OH, self._Hc)               # (OH, Hc)
        wx = _bilinear_weight_matrix(OW, self._Wc)               # (OW, Wc)
        wxt = np.zeros((self._Wc, OWp), dtype=np.float32)        # pre-transposed + pad
        wxt[:, :OW] = wx.T
        self._wy = jnp.asarray(wy)
        self._wxt = jnp.asarray(wxt)

    def __call__(self, x: jax.Array, *, _force_order=None) -> jax.Array:
        # x: (N, C, H, W)
        xc = x[:, :, self.offset_y_min:self.offset_y_max,
                     self.offset_x_min:self.offset_x_max]
        assert xc.shape[2] == self._Hc and xc.shape[3] == self._Wc, (
            "input spatial extent inconsistent with input_scope")
        return _bev_resize(xc, self._wy, self._wxt, self.canvas_size[1],
                           compute_dtype=self.compute_dtype,
                           force_order=_force_order)


# ----------------------------------------------------------------------------
# Demo / self-check
# ----------------------------------------------------------------------------
if __name__ == "__main__":
    # input grid 16x16, crop -> 12x12, canvas -> 16x16
    input_scope = [(-8.0, 8.0, 1.0), (-8.0, 8.0, 1.0), (-5.0, 3.0, 8.0)]
    output_scope = [(-6.0, 6.0, 0.75), (-6.0, 6.0, 0.75)]

    mod = BEVGridTransform(input_scope=input_scope, output_scope=output_scope)

    key = jax.random.PRNGKey(0)
    N, C, H, W = 2, 4, 16, 16
    x = jax.random.normal(key, (N, C, H, W), dtype=jnp.float32)

    # Pure-JAX reference using the same separable-matmul formulation (f32).
    xc = x[:, :, mod.offset_y_min:mod.offset_y_max,
               mod.offset_x_min:mod.offset_x_max]
    OH, OW = mod.canvas_size
    Wy = jnp.asarray(_bilinear_weight_matrix(OH, xc.shape[2]))
    Wx = jnp.asarray(_bilinear_weight_matrix(OW, xc.shape[3]))
    y_ref = jnp.einsum("oh,nchw,pw->ncop", Wy, xc, Wx)

    # auto-selected contraction order
    y = jax.block_until_ready(mod(x))
    assert y.shape == (N, C, OH, OW), y.shape
    assert jnp.allclose(y, y_ref, atol=1e-5, rtol=1e-5)

    # exercise both kernel variants explicitly
    y_wy = jax.block_until_ready(mod(x, _force_order="wy_first"))
    y_wx = jax.block_until_ready(mod(x, _force_order="wx_first"))
    assert jnp.allclose(y_wy, y_ref, atol=1e-5, rtol=1e-5)
    assert jnp.allclose(y_wx, y_ref, atol=1e-5, rtol=1e-5)

    print("KERNEL_OK")
</pallas_src>

<mosaic_0001>
module attributes {stable_mosaic.version = 11 : i64} {
  func.func @kernel(%arg0: i32, %arg1: memref<4x12x12xf32, #tpu.memory_space<vmem>>, %arg2: memref<16x12xf32, #tpu.memory_space<vmem>>, %arg3: memref<12x128xf32, #tpu.memory_space<vmem>>, %arg4: memref<64x128xf32, #tpu.memory_space<vmem>>, %arg5: memref<64x12xf32, #tpu.memory_space<vmem>>) attributes {dimension_semantics = [#tpu.dimension_semantics<parallel>], iteration_bounds = array<i64: 2>, scalar_prefetch = 0 : i64, scratch_operands = 1 : i64, tpu.core_type = #tpu.core_type<tc>, window_params = [{transform_indices = @transform_0, window_bounds = array<i64: 4, 12, 12>}, {pipeline_mode = #tpu.pipeline_mode<synchronous>, transform_indices = @transform_1, window_bounds = array<i64: 16, 12>}, {pipeline_mode = #tpu.pipeline_mode<synchronous>, transform_indices = @transform_2, window_bounds = array<i64: 12, 128>}, {transform_indices = @transform_3, window_bounds = array<i64: 64, 128>}]} {
    %c0 = arith.constant 0 : index
    %c0_0 = arith.constant 0 : index
    %0 = vector.load %arg2[%c0, %c0_0] : memref<16x12xf32, #tpu.memory_space<vmem>>, vector<16x12xf32>
    %c0_1 = arith.constant 0 : index
    %c0_2 = arith.constant 0 : index
    %c0_3 = arith.constant 0 : index
    %1 = vector.load %arg1[%c0_1, %c0_2, %c0_3] : memref<4x12x12xf32, #tpu.memory_space<vmem>>, vector<1x12x12xf32>
    %2 = vector.shape_cast %1 : vector<1x12x12xf32> to vector<12x12xf32>
    %cst = arith.constant dense<0.000000e+00> : vector<16x12xf32>
    %3 = tpu.matmul %0, %2, %cst {dimension_numbers = #tpu.dot_dimension_numbers<[1], [0], [0], [1], [0, 0, 1, 1], [], []>} : vector<16x12xf32>, vector<12x12xf32>, vector<16x12xf32> -> vector<16x12xf32>
    %c0_4 = arith.constant 0 : index
    %c0_5 = arith.constant 0 : index
    %4 = vector.load %arg5[%c0_4, %c0_5] : memref<64x12xf32, #tpu.memory_space<vmem>>, vector<16x12xf32>
    tpu.vector_store %arg5[%c0_4, %c0_5], %3 {strides = array<i32>} : memref<64x12xf32, #tpu.memory_space<vmem>>, vector<16x12xf32>,
    %c1 = arith.constant 1 : index
    %c0_6 = arith.constant 0 : index
    %c0_7 = arith.constant 0 : index
    %5 = vector.load %arg1[%c1, %c0_6, %c0_7] : memref<4x12x12xf32, #tpu.memory_space<vmem>>, vector<1x12x12xf32>
    %6 = vector.shape_cast %5 : vector<1x12x12xf32> to vector<12x12xf32>
    %cst_8 = arith.constant dense<0.000000e+00> : vector<16x12xf32>
    %7 = tpu.matmul %0, %6, %cst_8 {dimension_numbers = #tpu.dot_dimension_numbers<[1], [0], [0], [1], [0, 0, 1, 1], [], []>} : vector<16x12xf32>, vector<12x12xf32>, vector<16x12xf32> -> vector<16x12xf32>
    %c16 = arith.constant 16 : index
    %c0_9 = arith.constant 0 : index
    %8 = vector.load %arg5[%c16, %c0_9] : memref<64x12xf32, #tpu.memory_space<vmem>>, vector<16x12xf32>
    tpu.vector_store %arg5[%c16, %c0_9], %7 {strides = array<i32>} : memref<64x12xf32, #tpu.memory_space<vmem>>, vector<16x12xf32>,
    %c2 = arith.constant 2 : index
    %c0_10 = arith.constant 0 : index
    %c0_11 = arith.constant 0 : index
    %9 = vector.load %arg1[%c2, %c0_10, %c0_11] : memref<4x12x12xf32, #tpu.memory_space<vmem>>, vector<1x12x12xf32>
    %10 = vector.shape_cast %9 : vector<1x12x12xf32> to vector<12x12xf32>
    %cst_12 = arith.constant dense<0.000000e+00> : vector<16x12xf32>
    %11 = tpu.matmul %0, %10, %cst_12 {dimension_numbers = #tpu.dot_dimension_numbers<[1], [0], [0], [1], [0, 0, 1, 1], [], []>} : vector<16x12xf32>, vector<12x12xf32>, vector<16x12xf32> -> vector<16x12xf32>
    %c32 = arith.constant 32 : index
    %c0_13 = arith.constant 0 : index
    %12 = vector.load %arg5[%c32, %c0_13] : memref<64x12xf32, #tpu.memory_space<vmem>>, vector<16x12xf32>
    tpu.vector_store %arg5[%c32, %c0_13], %11 {strides = array<i32>} : memref<64x12xf32, #tpu.memory_space<vmem>>, vector<16x12xf32>,
    %c3 = arith.constant 3 : index
    %c0_14 = arith.constant 0 : index
    %c0_15 = arith.constant 0 : index
    %13 = vector.load %arg1[%c3, %c0_14, %c0_15] : memref<4x12x12xf32, #tpu.memory_space<vmem>>, vector<1x12x12xf32>
    %14 = vector.shape_cast %13 : vector<1x12x12xf32> to vector<12x12xf32>
    %cst_16 = arith.constant dense<0.000000e+00> : vector<16x12xf32>
    %15 = tpu.matmul %0, %14, %cst_16 {dimension_numbers = #tpu.dot_dimension_numbers<[1], [0], [0], [1], [0, 0, 1, 1], [], []>} : vector<16x12xf32>, vector<12x12xf32>, vector<16x12xf32> -> vector<16x12xf32>
    %c48 = arith.constant 48 : index
    %c0_17 = arith.constant 0 : index
    %16 = vector.load %arg5[%c48, %c0_17] : memref<64x12xf32, #tpu.memory_space<vmem>>, vector<16x12xf32>
    tpu.vector_store %arg5[%c48, %c0_17], %15 {strides = array<i32>} : memref<64x12xf32, #tpu.memory_space<vmem>>, vector<16x12xf32>,
    %c0_18 = arith.constant 0 : index
    %c0_19 = arith.constant 0 : index
    %17 = vector.load %arg5[%c0_18, %c0_19] : memref<64x12xf32, #tpu.memory_space<vmem>>, vector<64x12xf32>
    %c0_20 = arith.constant 0 : index
    %c0_21 = arith.constant 0 : index
    %18 = vector.load %arg3[%c0_20, %c0_21] : memref<12x128xf32, #tpu.memory_space<vmem>>, vector<12x128xf32>
    %cst_22 = arith.constant dense<0.000000e+00> : vector<64x128xf32>
    %19 = tpu.matmul %17, %18, %cst_22 {dimension_numbers = #tpu.dot_dimension_numbers<[1], [0], [0], [1], [0, 0, 1, 1], [], []>} : vector<64x12xf32>, vector<12x128xf32>, vector<64x128xf32> -> vector<64x128xf32>
    %c0_23 = arith.constant 0 : index
    %c0_24 = arith.constant 0 : index
    %20 = vector.load %arg4[%c0_23, %c0_24] : memref<64x128xf32, #tpu.memory_space<vmem>>, vector<64x128xf32>
    tpu.vector_store %arg4[%c0_23, %c0_24], %19 {strides = array<i32>} : memref<64x128xf32, #tpu.memory_space<vmem>>, vector<64x128xf32>,
    return
  }
  func.func @transform_0(%arg0: i32) -> (i32, i32, i32) {
    %c0_i32 = arith.constant 0 : i32
    %c0_i32_0 = arith.constant 0 : i32
    %c0_i32_1 = arith.constant 0 : i32
    return %arg0, %c0_i32, %c0_i32_0 : i32, i32, i32
  }
  func.func @transform_1(%arg0: i32) -> (i32, i32) {
    %c0_i32 = arith.constant 0 : i32
    %c0_i32_0 = arith.constant 0 : i32
    %c0_i32_1 = arith.constant 0 : i32
    return %c0_i32, %c0_i32_0 : i32, i32
  }
  func.func @transform_2(%arg0: i32) -> (i32, i32) {
    %c0_i32 = arith.constant 0 : i32
    %c0_i32_0 = arith.constant 0 : i32
    %c0_i32_1 = arith.constant 0 : i32
    return %c0_i32, %c0_i32_0 : i32, i32
  }
  func.func @transform_3(%arg0: i32) -> (i32, i32) {
    %c0_i32 = arith.constant 0 : i32
    %c0_i32_0 = arith.constant 0 : i32
    return %arg0, %c0_i32 : i32, i32
  }
}

</mosaic_0001>

<llo_original>
// kernel: tpu_custom_call.1
$region0: #{tpu_custom_call.1}
  #allocation0 [shape = 'u32[]', space=smem, size = 0x4, offset = 0x4, fixed_abs, tag = 'smem constant byte address 0x4 - core index']
  #allocation1 [shape = 'u32[144,128]{1,0:T(1,128)}', space=vmem, size = 0x12000, scoped, tag = 'internal scratch']
  #allocation2 [shape = 'f32[64,12]{1,0:T(8,128)}', space=vmem, size = 0x8000, scoped, tag = 'scratch operand']
  %s0 = inlined_call_operand.vmem [shape: f32[8,12,12], index: 0, kind: input, shape index: {}]
  %s1 = inlined_call_operand.vmem [shape: f32[16,12], index: 1, kind: input, shape index: {}]
  %s2 = inlined_call_operand.vmem [shape: f32[12,128], index: 2, kind: input, shape index: {}]
  %s3 = inlined_call_operand.hbm [shape: f32[128,128], index: 3, kind: output, shape index: {}]
  %s4 = sld [smem:[#allocation0]]
  $region45: #{tpu_custom_call.1} parent=0
    _
  %s6 = ssub.s32 1, %s4
  %s7 = scalar_select 0, %s6, %s4
  $region1: #{tpu_custom_call.1} parent=0
    #allocation3 [shape = 'u8[65536]{0}', space=vmem, size = 0x10000, scoped, tag = 'output window, operand 0']
    #allocation4 [shape = 's32[2]{0}', space=sflag, size = 0x8, scoped, tag = 'scoped memory for tpu_custom_call.1']
    %8 = vsyncpa [#allocation4], 0
    %s9 = scalar_lea.sflag [#allocation4], 1
    %10 = vsyncpa %s9, 0
    loop: start=0, step=1, limit=4
    $region2: #{tpu_custom_call.1} parent=1 // loop_pre_header
      _
    $region3: #{tpu_custom_call.1} parent=1 // loop_header
      %s12 = sphi 0, %s16
      %p13 = scmp.ge.s32.totalorder %s12, 4
      %s22 = sphi 0, %s24
      %s25 = sphi 0, %s22
      %s26 = sphi 0, %s25
      %s42 = sphi 0, %s26
      %s46 = sphi 0, %s46
      %s48 = sphi 0, %s46
      %s49 = sphi 0, %s48
      %s63 = sphi 0, %s49
      %s67 = sphi 0, %s67
      %s69 = sphi 0, %s67
      %s70 = sphi 0, %s69
      %s84 = sphi 0, %s70
      %s90 = sphi 0, %s92
      %s93 = sphi 0, %s90
      %s94 = sphi 0, %s93
      %s110 = sphi 0, %s94
    $region4: #{tpu_custom_call.1} parent=1 // loop_header_branch
      %15 = sbr.rel (%p13) target = $region8
    $region5: #{tpu_custom_call.1} parent=1 // loop_body
      %s17 = ssub.s32 %s12, 1
      %s18 = ssub.s32 %s12, 2
      %s19 = sadd.s32 %s12, 1
      %s20 = ssub.s32 %s12, %s19
      %p21 = scmp.eq.s32.totalorder %s20, 0
      %s23 = sadd.s32 %s22, 1
      %s24 = scalar_select %p21, %s22, %s23
      %p27 = pneg %p21
      %p28 = scmp.eq.s32.totalorder %s12, 1
      %p29 = por %p27, %p28
      %p30 = scmp.ne.s32.totalorder %s22, %s25
      %p31 = scmp.eq.s32.totalorder %s12, 0
      %p32 = por %p30, %p31
      %p33 = scmp.ne.s32.totalorder %s22, %s25
      %p34 = scmp.eq.s32.totalorder %s17, 1
      %p35 = por %p33, %p34
      %p36 = scmp.ne.s32.totalorder %s25, %s26
      %p37 = scmp.eq.s32.totalorder %s17, 0
      %p38 = por %p36, %p37
      %p39 = scmp.ne.s32.totalorder %s25, %s26
      %p40 = scmp.eq.s32.totalorder %s18, 1
      %p41 = por %p39, %p40
      %p43 = scmp.ne.s32.totalorder %s26, %s42
      %p44 = scmp.eq.s32.totalorder %s18, 0
      %p45 = por %p43, %p44
      %s47 = sadd.s32 %s46, 1
      %p50 = scmp.eq.s32.totalorder %s12, 1
      %p51 = scmp.ne.s32.totalorder %s46, %s48
      %p52 = scmp.eq.s32.totalorder %s12, 0
      %p53 = por %p51, %p52
      %p54 = scmp.ne.s32.totalorder %s46, %s48
      %p55 = scmp.eq.s32.totalorder %s17, 1
      %p56 = por %p54, %p55
      %p57 = scmp.ne.s32.totalorder %s48, %s49
      %p58 = scmp.eq.s32.totalorder %s17, 0
      %p59 = por %p57, %p58
      %p60 = scmp.ne.s32.totalorder %s48, %s49
      %p61 = scmp.eq.s32.totalorder %s18, 1
      %p62 = por %p60, %p61
      %p64 = scmp.ne.s32.totalorder %s49, %s63
      %p65 = scmp.eq.s32.totalorder %s18, 0
      %p66 = por %p64, %p65
      %s68 = sadd.s32 %s67, 1
      %p71 = scmp.eq.s32.totalorder %s12, 1
      %p72 = scmp.ne.s32.totalorder %s67, %s69
      %p73 = scmp.eq.s32.totalorder %s12, 0
      %p74 = por %p72, %p73
      %p75 = scmp.ne.s32.totalorder %s67, %s69
      %p76 = scmp.eq.s32.totalorder %s17, 1
      %p77 = por %p75, %p76
      %p78 = scmp.ne.s32.totalorder %s69, %s70
      %p79 = scmp.eq.s32.totalorder %s17, 0
      %p80 = por %p78, %p79
      %p81 = scmp.ne.s32.totalorder %s69, %s70
      %p82 = scmp.eq.s32.totalorder %s18, 1
      %p83 = por %p81, %p82
      %p85 = scmp.ne.s32.totalorder %s70, %s84
      %p86 = scmp.eq.s32.totalorder %s18, 0
      %p87 = por %p85, %p86
      %s88 = ssub.s32 %s12, %s19
      %p89 = scmp.eq.s32.totalorder %s88, 0
      %s91 = sadd.s32 %s90, 1
      %s92 = scalar_select %p89, %s90, %s91
      %p95 = pneg %p89
      %p96 = scmp.eq.s32.totalorder %s12, 1
      %p97 = por %p95, %p96
      %p98 = scmp.ne.s32.totalorder %s90, %s93
      %p99 = scmp.eq.s32.totalorder %s12, 0
      %p100 = por %p98, %p99
      %p101 = scmp.ne.s32.totalorder %s90, %s93
      %p102 = scmp.eq.s32.totalorder %s17, 1
      %p103 = por %p101, %p102
      %p104 = scmp.ne.s32.totalorder %s93, %s94
      %p105 = scmp.eq.s32.totalorder %s17, 0
      %p106 = por %p104, %p105
      %p107 = scmp.ne.s32.totalorder %s93, %s94
      %p108 = scmp.eq.s32.totalorder %s18, 1
      %p109 = por %p107, %p108
      %p111 = scmp.ne.s32.totalorder %s94, %s110
      %p112 = scmp.eq.s32.totalorder %s18, 0
      %p113 = por %p111, %p112
      %p114 = scmp.le.s32.totalorder 1, %s12
      %p115 = scmp.lt.s32.totalorder %s12, 3
      %p116 = pnand %p114, %p115
      %p117 = pneg %p116
      // Predicated region
      $region9: #{tpu_custom_call.1} parent=5 // pred_check
        _
      $region10: #{tpu_custom_call.1} parent=5 // pred_check_branch
        %119 = sbr.rel (%p116) target = $region12
      $region11: #{tpu_custom_call.1} parent=5 // pred_region
        %s120 = ssub.s32 %s12, 1
        // Predicated region
        $region13: #{tpu_custom_call.1} parent=11 // pred_check
          %p121 = pneg %p59
        $region14: #{tpu_custom_call.1} parent=11 // pred_check_branch
          %123 = sbr.rel (%p121) target = $region16
        $region15: #{tpu_custom_call.1} parent=11 // pred_region
          _
        $region16: #{tpu_custom_call.1} parent=11 // pred_fallthru
          _
        // Predicated region
        $region17: #{tpu_custom_call.1} parent=11 // pred_check
          %p124 = pneg %p80
        $region18: #{tpu_custom_call.1} parent=11 // pred_check_branch
          %126 = sbr.rel (%p124) target = $region20
        $region19: #{tpu_custom_call.1} parent=11 // pred_region
          _
        $region20: #{tpu_custom_call.1} parent=11 // pred_fallthru
          _
      $region12: #{tpu_custom_call.1} parent=5 // pred_fallthru
        _
      %p127 = scmp.lt.s32.totalorder %s12, 2
      // Predicated region
      $region21: #{tpu_custom_call.1} parent=5 // pred_check
        %p128 = pneg %p127
      $region22: #{tpu_custom_call.1} parent=5 // pred_check_branch
        %130 = sbr.rel (%p128) target = $region24
      $region23: #{tpu_custom_call.1} parent=5 // pred_region
        // Predicated region
        $region25: #{tpu_custom_call.1} parent=23 // pred_check
          %p131 = pneg %p32
        $region26: #{tpu_custom_call.1} parent=23 // pred_check_branch
          %133 = sbr.rel (%p131) target = $region28
        $region27: #{tpu_custom_call.1} parent=23 // pred_region
          %s134 = smul.u32 4, %s12
          %p135 = scmp.lt.s32.totalorder %s134, 7
          %s136 = scalar_select %p135, %s134, 7
          %s137 = smul.addr %s136, 2
          %s138 = smul.addr %s137, 8
          %s139 = scalar_lea.vmem %s0, %s138
          %s140 = smul.u32 4, %s12
        $region28: #{tpu_custom_call.1} parent=23 // pred_fallthru
          _
      $region24: #{tpu_custom_call.1} parent=5 // pred_fallthru
        _
      %p141 = scmp.le.s32.totalorder 1, %s12
      %p142 = scmp.lt.s32.totalorder %s12, 3
      %p143 = pnand %p141, %p142
      %p144 = pneg %p143
      // Predicated region
      $region29: #{tpu_custom_call.1} parent=5 // pred_check
        _
      $region30: #{tpu_custom_call.1} parent=5 // pred_check_branch
        %146 = sbr.rel (%p143) target = $region32
      $region31: #{tpu_custom_call.1} parent=5 // pred_region
        %s147 = ssub.s32 %s12, 1
        %s148 = smul.u32 4, %s17
        %p149 = scmp.lt.s32.totalorder %s148, 7
        %s150 = scalar_select %p149, %s148, 7
        %s151 = smul.addr %s150, 2
        %s152 = smul.addr %s151, 8
        %s153 = scalar_lea.vmem %s0, %s152
        %p154 = pneg %p38
        %p155 = pneg %p35
        %p156 = pneg %p59
        %p157 = pneg %p56
        %p158 = pneg %p80
        %p159 = pneg %p77
        %p160 = pneg %p106
        %p161 = pneg %p103
        %s162 = sand.u32 %s93, 1
        %s163 = scalar_lea.sflag [#allocation4], %s162
        %s164 = sand.u32 %s93, 1
        %s165 = smul.addr %s164, 64
        %s166 = scalar_lea.vmem [#allocation3], %s165
        %s167 = smul.u32 4, %s17
        %p168 = scmp.lt.s32.totalorder %s167, 7
        %s169 = scalar_select %p168, %s167, 7
        %s170 = smul.addr %s169, 2
        %s171 = smul.addr %s170, 8
        %s172 = scalar_lea.vmem %s0, %s171
        %s173 = smul.u32 4, %s17
        %s174 = smul.u32 8, %s17
        %v175 = vld [vmem:[%s1] sm:$0xff]
        %v176 = vld [vmem:[%s1 + $0x8] sm:$0xff]
        %v177 = vld [vmem:[%s172] sm:$0xff]
        %v178 = vld [vmem:[%s172 + $0x8] sm:$0xf]
        %vm179 = vcmask 97280
        %v181 = vsel %vm179, %v175, 0
        %v184 = vsel %vm179, %v176, 0
        %vm186 = vcmask 1043456
        %v188 = vsel %vm186, %v178, 0
        %190 = vmatprep.subr.mxu0 0.0
        %191 = vmatpush1.msra.mxu0 %v177
        %192 = vmatprep.subr.mxu0 0.0
        %193 = vmatpush1.msra.mxu0 %v188
        %194 = vmatprep.subr.mxu0 0.0
        %195 = vmatpush1.msra.mxu0 0.0
        %196 = vmatprep.subr.mxu0 0.0
        %197 = vmatpush1.msra.mxu0 0.0
        %198 = vmatprep.subr.mxu0 0.0
        %199 = vmatpush1.msra.mxu0 0.0
        %200 = vmatprep.subr.mxu0 0.0
        %201 = vmatpush1.msra.mxu0 0.0
        %202 = vmatprep.subr.mxu0 0.0
        %203 = vmatpush1.msra.mxu0 0.0
        %204 = vmatprep.subr.mxu0 0.0
        %205 = vmatpush1.msra.mxu0 0.0
        %206 = vmatprep.subr.mxu0 0.0
        %207 = vmatpush1.msra.mxu0 0.0
        %208 = vmatprep.subr.mxu0 0.0
        %209 = vmatpush1.msra.mxu0 0.0
        %210 = vmatprep.subr.mxu0 0.0
        %211 = vmatpush1.msra.mxu0 0.0
        %212 = vmatprep.subr.mxu0 0.0
        %213 = vmatpush1.msra.mxu0 0.0
        %214 = vmatprep.subr.mxu0 0.0
        %215 = vmatpush1.msra.mxu0 0.0
        %216 = vmatprep.subr.mxu0 0.0
        %217 = vmatpush1.msra.mxu0 0.0
        %218 = vmatprep.subr.mxu0 0.0
        %219 = vmatpush1.msra.mxu0 0.0
        %220 = vmatprep.subr.mxu0 0.0
        %221 = vmatpush1.msra.mxu0 0.0
        %222 = vmatprep.subr.mxu0 0.0
        %223 = vmatpush1.msra.mxu0 0.0
        %224 = vmatprep.subr.mxu0 0.0
        %225 = vmatpush1.msra.mxu0 0.0
        %226 = vmatprep.subr.mxu0 0.0
        %227 = vmatpush1.msra.mxu0 0.0
        %228 = vmatprep.subr.mxu0 0.0
        %229 = vmatpush1.msra.mxu0 0.0
        %230 = vmatprep.subr.mxu0 0.0
        %231 = vmatpush1.msra.mxu0 0.0
        %232 = vmatprep.subr.mxu0 0.0
        %233 = vmatpush1.msra.mxu0 0.0
        %234 = vmatprep.subr.mxu0 0.0
        %235 = vmatpush1.msra.mxu0 0.0
        %236 = vmatprep.subr.mxu0 0.0
        %237 = vmatpush1.msra.mxu0 0.0
        %238 = vmatprep.subr.mxu0 0.0
        %239 = vmatpush1.msra.mxu0 0.0
        %240 = vmatprep.subr.mxu0 0.0
        %241 = vmatpush1.msra.mxu0 0.0
        %242 = vmatprep.subr.mxu0 0.0
        %243 = vmatpush1.msra.mxu0 0.0
        %244 = vmatprep.subr.mxu0 0.0
        %245 = vmatpush1.msra.mxu0 0.0
        %246 = vmatprep.subr.mxu0 0.0
        %247 = vmatpush1.msra.mxu0 0.0
        %248 = vmatprep.subr.mxu0 0.0
        %249 = vmatpush1.msra.mxu0 0.0
        %250 = vmatprep.subr.mxu0 0.0
        %251 = vmatpush1.msra.mxu0 0.0
        %252 = vmatprep.subr.mxu0 0.0
        %253 = vmatpush1.msra.mxu0 0.0
        %254 = vmatprep.mubr.f32.mxu0 0.0
        %255 = vmatmul.mubr.f32.gmra.mrb[0].mxu0 %v181
        %v256 = vpop.f32.mrb[0].mxu0
        %v257 = vadd.f32 0.0, %v256
        %v258 = vpop.f32.mrb[0].mxu0
        %259 = vmatprep.mubr.f32.mxu0 0.0
        %260 = vmatmul.mubr.f32.gmra.mrb[0].mxu0 %v184
        %v261 = vpop.f32.mrb[0].mxu0
        %v262 = vadd.f32 0.0, %v261
        %v263 = vpop.f32.mrb[0].mxu0
        %264 = vdwg.mxu0
        %265 = vst.msk [vmem:[#allocation2] sm:$0xff] %vm179, %v257
        %266 = vst.msk [vmem:[#allocation2 + $0x8] sm:$0xff] %vm179, %v262
        %s267 = scalar_lea.vmem %s172, 16
        %v268 = vld [vmem:[%s267] sm:$0xff]
        %v269 = vld [vmem:[%s267 + $0x8] sm:$0xf]
        %v271 = vsel %vm186, %v269, 0
        %273 = vmatprep.subr.mxu0 0.0
        %274 = vmatpush1.msra.mxu0 %v268
        %275 = vmatprep.subr.mxu0 0.0
        %276 = vmatpush1.msra.mxu0 %v271
        %277 = vmatprep.subr.mxu0 0.0
        %278 = vmatpush1.msra.mxu0 0.0
        %279 = vmatprep.subr.mxu0 0.0
        %280 = vmatpush1.msra.mxu0 0.0
        %281 = vmatprep.subr.mxu0 0.0
        %282 = vmatpush1.msra.mxu0 0.0
        %283 = vmatprep.subr.mxu0 0.0
        %284 = vmatpush1.msra.mxu0 0.0
        %285 = vmatprep.subr.mxu0 0.0
        %286 = vmatpush1.msra.mxu0 0.0
        %287 = vmatprep.subr.mxu0 0.0
        %288 = vmatpush1.msra.mxu0 0.0
        %289 = vmatprep.subr.mxu0 0.0
        %290 = vmatpush1.msra.mxu0 0.0
        %291 = vmatprep.subr.mxu0 0.0
        %292 = vmatpush1.msra.mxu0 0.0
        %293 = vmatprep.subr.mxu0 0.0
        %294 = vmatpush1.msra.mxu0 0.0
        %295 = vmatprep.subr.mxu0 0.0
        %296 = vmatpush1.msra.mxu0 0.0
        %297 = vmatprep.subr.mxu0 0.0
        %298 = vmatpush1.msra.mxu0 0.0
        %299 = vmatprep.subr.mxu0 0.0
        %300 = vmatpush1.msra.mxu0 0.0
        %301 = vmatprep.subr.mxu0 0.0
        %302 = vmatpush1.msra.mxu0 0.0
        %303 = vmatprep.subr.mxu0 0.0
        %304 = vmatpush1.msra.mxu0 0.0
        %305 = vmatprep.subr.mxu0 0.0
        %306 = vmatpush1.msra.mxu0 0.0
        %307 = vmatprep.subr.mxu0 0.0
        %308 = vmatpush1.msra.mxu0 0.0
        %309 = vmatprep.subr.mxu0 0.0
        %310 = vmatpush1.msra.mxu0 0.0
        %311 = vmatprep.subr.mxu0 0.0
        %312 = vmatpush1.msra.mxu0 0.0
        %313 = vmatprep.subr.mxu0 0.0
        %314 = vmatpush1.msra.mxu0 0.0
        %315 = vmatprep.subr.mxu0 0.0
        %316 = vmatpush1.msra.mxu0 0.0
        %317 = vmatprep.subr.mxu0 0.0
        %318 = vmatpush1.msra.mxu0 0.0
        %319 = vmatprep.subr.mxu0 0.0
        %320 = vmatpush1.msra.mxu0 0.0
        %321 = vmatprep.subr.mxu0 0.0
        %322 = vmatpush1.msra.mxu0 0.0
        %323 = vmatprep.subr.mxu0 0.0
        %324 = vmatpush1.msra.mxu0 0.0
        %325 = vmatprep.subr.mxu0 0.0
        %326 = vmatpush1.msra.mxu0 0.0
        %327 = vmatprep.subr.mxu0 0.0
        %328 = vmatpush1.msra.mxu0 0.0
        %329 = vmatprep.subr.mxu0 0.0
        %330 = vmatpush1.msra.mxu0 0.0
        %331 = vmatprep.subr.mxu0 0.0
        %332 = vmatpush1.msra.mxu0 0.0
        %333 = vmatprep.subr.mxu0 0.0
        %334 = vmatpush1.msra.mxu0 0.0
        %335 = vmatprep.subr.mxu0 0.0
        %336 = vmatpush1.msra.mxu0 0.0
        %337 = vmatprep.mubr.f32.mxu0 0.0
        %338 = vmatmul.mubr.f32.gmra.mrb[0].mxu0 %v181
        %v339 = vpop.f32.mrb[0].mxu0
        %v340 = vadd.f32 0.0, %v339
        %v341 = vpop.f32.mrb[0].mxu0
        %342 = vmatprep.mubr.f32.mxu0 0.0
        %343 = vmatmul.mubr.f32.gmra.mrb[0].mxu0 %v184
        %v344 = vpop.f32.mrb[0].mxu0
        %v345 = vadd.f32 0.0, %v344
        %v346 = vpop.f32.mrb[0].mxu0
        %347 = vdwg.mxu0
        %348 = vst.msk [vmem:[#allocation2 + $0x10] sm:$0xff] %vm179, %v340
        %349 = vst.msk [vmem:[#allocation2 + $0x18] sm:$0xff] %vm179, %v345
        %s350 = scalar_lea.vmem %s172, 32
        %v351 = vld [vmem:[%s350] sm:$0xff]
        %v352 = vld [vmem:[%s350 + $0x8] sm:$0xf]
        %v354 = vsel %vm186, %v352, 0
        %356 = vmatprep.subr.mxu0 0.0
        %357 = vmatpush1.msra.mxu0 %v351
        %358 = vmatprep.subr.mxu0 0.0
        %359 = vmatpush1.msra.mxu0 %v354
        %360 = vmatprep.subr.mxu0 0.0
        %361 = vmatpush1.msra.mxu0 0.0
        %362 = vmatprep.subr.mxu0 0.0
        %363 = vmatpush1.msra.mxu0 0.0
        %364 = vmatprep.subr.mxu0 0.0
        %365 = vmatpush1.msra.mxu0 0.0
        %366 = vmatprep.subr.mxu0 0.0
        %367 = vmatpush1.msra.mxu0 0.0
        %368 = vmatprep.subr.mxu0 0.0
        %369 = vmatpush1.msra.mxu0 0.0
        %370 = vmatprep.subr.mxu0 0.0
        %371 = vmatpush1.msra.mxu0 0.0
        %372 = vmatprep.subr.mxu0 0.0
        %373 = vmatpush1.msra.mxu0 0.0
        %374 = vmatprep.subr.mxu0 0.0
        %375 = vmatpush1.msra.mxu0 0.0
        %376 = vmatprep.subr.mxu0 0.0
        %377 = vmatpush1.msra.mxu0 0.0
        %378 = vmatprep.subr.mxu0 0.0
        %379 = vmatpush1.msra.mxu0 0.0
        %380 = vmatprep.subr.mxu0 0.0
        %381 = vmatpush1.msra.mxu0 0.0
        %382 = vmatprep.subr.mxu0 0.0
        %383 = vmatpush1.msra.mxu0 0.0
        %384 = vmatprep.subr.mxu0 0.0
        %385 = vmatpush1.msra.mxu0 0.0
        %386 = vmatprep.subr.mxu0 0.0
        %387 = vmatpush1.msra.mxu0 0.0
        %388 = vmatprep.subr.mxu0 0.0
        %389 = vmatpush1.msra.mxu0 0.0
        %390 = vmatprep.subr.mxu0 0.0
        %391 = vmatpush1.msra.mxu0 0.0
        %392 = vmatprep.subr.mxu0 0.0
        %393 = vmatpush1.msra.mxu0 0.0
        %394 = vmatprep.subr.mxu0 0.0
        %395 = vmatpush1.msra.mxu0 0.0
        %396 = vmatprep.subr.mxu0 0.0
        %397 = vmatpush1.msra.mxu0 0.0
        %398 = vmatprep.subr.mxu0 0.0
        %399 = vmatpush1.msra.mxu0 0.0
        %400 = vmatprep.subr.mxu0 0.0
        %401 = vmatpush1.msra.mxu0 0.0
        %402 = vmatprep.subr.mxu0 0.0
        %403 = vmatpush1.msra.mxu0 0.0
        %404 = vmatprep.subr.mxu0 0.0
        %405 = vmatpush1.msra.mxu0 0.0
        %406 = vmatprep.subr.mxu0 0.0
        %407 = vmatpush1.msra.mxu0 0.0
        %408 = vmatprep.subr.mxu0 0.0
        %409 = vmatpush1.msra.mxu0 0.0
        %410 = vmatprep.subr.mxu0 0.0
        %411 = vmatpush1.msra.mxu0 0.0
        %412 = vmatprep.subr.mxu0 0.0
        %413 = vmatpush1.msra.mxu0 0.0
        %414 = vmatprep.subr.mxu0 0.0
        %415 = vmatpush1.msra.mxu0 0.0
        %416 = vmatprep.subr.mxu0 0.0
        %417 = vmatpush1.msra.mxu0 0.0
        %418 = vmatprep.subr.mxu0 0.0
        %419 = vmatpush1.msra.mxu0 0.0
        %420 = vmatprep.mubr.f32.mxu0 0.0
        %421 = vmatmul.mubr.f32.gmra.mrb[0].mxu0 %v181
        %v422 = vpop.f32.mrb[0].mxu0
        %v423 = vadd.f32 0.0, %v422
        %v424 = vpop.f32.mrb[0].mxu0
        %425 = vmatprep.mubr.f32.mxu0 0.0
        %426 = vmatmul.mubr.f32.gmra.mrb[0].mxu0 %v184
        %v427 = vpop.f32.mrb[0].mxu0
        %v428 = vadd.f32 0.0, %v427
        %v429 = vpop.f32.mrb[0].mxu0
        %430 = vdwg.mxu0
        %431 = vst.msk [vmem:[#allocation2 + $0x20] sm:$0xff] %vm179, %v423
        %432 = vst.msk [vmem:[#allocation2 + $0x28] sm:$0xff] %vm179, %v428
        %s433 = scalar_lea.vmem %s172, 48
        %v434 = vld [vmem:[%s433] sm:$0xff]
        %v435 = vld [vmem:[%s433 + $0x8] sm:$0xf]
        %v437 = vsel %vm186, %v435, 0
        %439 = vmatprep.subr.mxu0 0.0
        %440 = vmatpush1.msra.mxu0 %v434
        %441 = vmatprep.subr.mxu0 0.0
        %442 = vmatpush1.msra.mxu0 %v437
        %443 = vmatprep.subr.mxu0 0.0
        %444 = vmatpush1.msra.mxu0 0.0
        %445 = vmatprep.subr.mxu0 0.0
        %446 = vmatpush1.msra.mxu0 0.0
        %447 = vmatprep.subr.mxu0 0.0
        %448 = vmatpush1.msra.mxu0 0.0
        %449 = vmatprep.subr.mxu0 0.0
        %450 = vmatpush1.msra.mxu0 0.0
        %451 = vmatprep.subr.mxu0 0.0
        %452 = vmatpush1.msra.mxu0 0.0
        %453 = vmatprep.subr.mxu0 0.0
        %454 = vmatpush1.msra.mxu0 0.0
        %455 = vmatprep.subr.mxu0 0.0
        %456 = vmatpush1.msra.mxu0 0.0
        %457 = vmatprep.subr.mxu0 0.0
        %458 = vmatpush1.msra.mxu0 0.0
        %459 = vmatprep.subr.mxu0 0.0
        %460 = vmatpush1.msra.mxu0 0.0
        %461 = vmatprep.subr.mxu0 0.0
        %462 = vmatpush1.msra.mxu0 0.0
        %463 = vmatprep.subr.mxu0 0.0
        %464 = vmatpush1.msra.mxu0 0.0
        %465 = vmatprep.subr.mxu0 0.0
        %466 = vmatpush1.msra.mxu0 0.0
        %467 = vmatprep.subr.mxu0 0.0
        %468 = vmatpush1.msra.mxu0 0.0
        %469 = vmatprep.subr.mxu0 0.0
        %470 = vmatpush1.msra.mxu0 0.0
        %471 = vmatprep.subr.mxu0 0.0
        %472 = vmatpush1.msra.mxu0 0.0
        %473 = vmatprep.subr.mxu0 0.0
        %474 = vmatpush1.msra.mxu0 0.0
        %475 = vmatprep.subr.mxu0 0.0
        %476 = vmatpush1.msra.mxu0 0.0
        %477 = vmatprep.subr.mxu0 0.0
        %478 = vmatpush1.msra.mxu0 0.0
        %479 = vmatprep.subr.mxu0 0.0
        %480 = vmatpush1.msra.mxu0 0.0
        %481 = vmatprep.subr.mxu0 0.0
        %482 = vmatpush1.msra.mxu0 0.0
        %483 = vmatprep.subr.mxu0 0.0
        %484 = vmatpush1.msra.mxu0 0.0
        %485 = vmatprep.subr.mxu0 0.0
        %486 = vmatpush1.msra.mxu0 0.0
        %487 = vmatprep.subr.mxu0 0.0
        %488 = vmatpush1.msra.mxu0 0.0
        %489 = vmatprep.subr.mxu0 0.0
        %490 = vmatpush1.msra.mxu0 0.0
        %491 = vmatprep.subr.mxu0 0.0
        %492 = vmatpush1.msra.mxu0 0.0
        %493 = vmatprep.subr.mxu0 0.0
        %494 = vmatpush1.msra.mxu0 0.0
        %495 = vmatprep.subr.mxu0 0.0
        %496 = vmatpush1.msra.mxu0 0.0
        %497 = vmatprep.subr.mxu0 0.0
        %498 = vmatpush1.msra.mxu0 0.0
        %499 = vmatprep.subr.mxu0 0.0
        %500 = vmatpush1.msra.mxu0 0.0
        %501 = vmatprep.subr.mxu0 0.0
        %502 = vmatpush1.msra.mxu0 0.0
        %503 = vmatprep.mubr.f32.mxu0 0.0
        %504 = vmatmul.mubr.f32.gmra.mrb[0].mxu0 %v181
        %v505 = vpop.f32.mrb[0].mxu0
        %v506 = vadd.f32 0.0, %v505
        %v507 = vpop.f32.mrb[0].mxu0
        %508 = vmatprep.mubr.f32.mxu0 0.0
        %509 = vmatmul.mubr.f32.gmra.mrb[0].mxu0 %v184
        %v510 = vpop.f32.mrb[0].mxu0
        %v511 = vadd.f32 0.0, %v510
        %v512 = vpop.f32.mrb[0].mxu0
        %513 = vdwg.mxu0
        %514 = vst.msk [vmem:[#allocation2 + $0x30] sm:$0xff] %vm179, %v506
        %515 = vst.msk [vmem:[#allocation2 + $0x38] sm:$0xff] %vm179, %v511
        %v516 = vld [vmem:[#allocation2] sm:$0xff]
        %v517 = vld [vmem:[#allocation2 + $0x8] sm:$0xff]
        %v518 = vld [vmem:[#allocation2 + $0x10] sm:$0xff]
        %v519 = vld [vmem:[#allocation2 + $0x18] sm:$0xff]
        %v520 = vld [vmem:[#allocation2 + $0x20] sm:$0xff]
        %v521 = vld [vmem:[#allocation2 + $0x28] sm:$0xff]
        %v522 = vld [vmem:[#allocation2 + $0x30] sm:$0xff]
        %v523 = vld [vmem:[#allocation2 + $0x38] sm:$0xff]
        %v524 = vld [vmem:[%s2] sm:$0xff]
        %v525 = vld [vmem:[%s2 + $0x8] sm:$0xf]
        %v527 = vsel %vm179, %v516, 0
        %v530 = vsel %vm179, %v517, 0
        %v533 = vsel %vm179, %v518, 0
        %v536 = vsel %vm179, %v519, 0
        %v539 = vsel %vm179, %v520, 0
        %v542 = vsel %vm179, %v521, 0
        %v545 = vsel %vm179, %v522, 0
        %v548 = vsel %vm179, %v523, 0
        %v551 = vsel %vm186, %v525, 0
        %553 = vmatprep.subr.mxu0 0.0
        %554 = vmatpush1.msra.mxu0 %v524
        %555 = vmatprep.subr.mxu0 0.0
        %556 = vmatpush1.msra.mxu0 %v551
        %557 = vmatprep.subr.mxu0 0.0
        %558 = vmatpush1.msra.mxu0 0.0
        %559 = vmatprep.subr.mxu0 0.0
        %560 = vmatpush1.msra.mxu0 0.0
        %561 = vmatprep.subr.mxu0 0.0
        %562 = vmatpush1.msra.mxu0 0.0
        %563 = vmatprep.subr.mxu0 0.0
        %564 = vmatpush1.msra.mxu0 0.0
        %565 = vmatprep.subr.mxu0 0.0
        %566 = vmatpush1.msra.mxu0 0.0
        %567 = vmatprep.subr.mxu0 0.0
        %568 = vmatpush1.msra.mxu0 0.0
        %569 = vmatprep.subr.mxu0 0.0
        %570 = vmatpush1.msra.mxu0 0.0
        %571 = vmatprep.subr.mxu0 0.0
        %572 = vmatpush1.msra.mxu0 0.0
        %573 = vmatprep.subr.mxu0 0.0
        %574 = vmatpush1.msra.mxu0 0.0
        %575 = vmatprep.subr.mxu0 0.0
        %576 = vmatpush1.msra.mxu0 0.0
        %577 = vmatprep.subr.mxu0 0.0
        %578 = vmatpush1.msra.mxu0 0.0
        %579 = vmatprep.subr.mxu0 0.0
        %580 = vmatpush1.msra.mxu0 0.0
        %581 = vmatprep.subr.mxu0 0.0
        %582 = vmatpush1.msra.mxu0 0.0
        %583 = vmatprep.subr.mxu0 0.0
        %584 = vmatpush1.msra.mxu0 0.0
        %585 = vmatprep.subr.mxu0 0.0
        %586 = vmatpush1.msra.mxu0 0.0
        %587 = vmatprep.subr.mxu0 0.0
        %588 = vmatpush1.msra.mxu0 0.0
        %589 = vmatprep.subr.mxu0 0.0
        %590 = vmatpush1.msra.mxu0 0.0
        %591 = vmatprep.subr.mxu0 0.0
        %592 = vmatpush1.msra.mxu0 0.0
        %593 = vmatprep.subr.mxu0 0.0
        %594 = vmatpush1.msra.mxu0 0.0
        %595 = vmatprep.subr.mxu0 0.0
        %596 = vmatpush1.msra.mxu0 0.0
        %597 = vmatprep.subr.mxu0 0.0
        %598 = vmatpush1.msra.mxu0 0.0
        %599 = vmatprep.subr.mxu0 0.0
        %600 = vmatpush1.msra.mxu0 0.0
        %601 = vmatprep.subr.mxu0 0.0
        %602 = vmatpush1.msra.mxu0 0.0
        %603 = vmatprep.subr.mxu0 0.0
        %604 = vmatpush1.msra.mxu0 0.0
        %605 = vmatprep.subr.mxu0 0.0
        %606 = vmatpush1.msra.mxu0 0.0
        %607 = vmatprep.subr.mxu0 0.0
        %608 = vmatpush1.msra.mxu0 0.0
        %609 = vmatprep.subr.mxu0 0.0
        %610 = vmatpush1.msra.mxu0 0.0
        %611 = vmatprep.subr.mxu0 0.0
        %612 = vmatpush1.msra.mxu0 0.0
        %613 = vmatprep.subr.mxu0 0.0
        %614 = vmatpush1.msra.mxu0 0.0
        %615 = vmatprep.subr.mxu0 0.0
        %616 = vmatpush1.msra.mxu0 0.0
        %617 = vmatprep.mubr.f32.mxu0 0.0
        %618 = vmatmul.mubr.f32.gmra.mrb[0].mxu0 %v527
        %v619 = vpop.f32.mrb[0].mxu0
        %v620 = vadd.f32 0.0, %v619
        %v621 = vpop.f32.mrb[0].mxu0
        %622 = vmatprep.mubr.f32.mxu0 0.0
        %623 = vmatmul.mubr.f32.gmra.mrb[0].mxu0 %v530
        %v624 = vpop.f32.mrb[0].mxu0
        %v625 = vadd.f32 0.0, %v624
        %v626 = vpop.f32.mrb[0].mxu0
        %627 = vmatprep.mubr.f32.mxu0 0.0
        %628 = vmatmul.mubr.f32.gmra.mrb[0].mxu0 %v533
        %v629 = vpop.f32.mrb[0].mxu0
        %v630 = vadd.f32 0.0, %v629
        %v631 = vpop.f32.mrb[0].mxu0
        %632 = vmatprep.mubr.f32.mxu0 0.0
        %633 = vmatmul.mubr.f32.gmra.mrb[0].mxu0 %v536
        %v634 = vpop.f32.mrb[0].mxu0
        %v635 = vadd.f32 0.0, %v634
        %v636 = vpop.f32.mrb[0].mxu0
        %637 = vmatprep.mubr.f32.mxu0 0.0
        %638 = vmatmul.mubr.f32.gmra.mrb[0].mxu0 %v539
        %v639 = vpop.f32.mrb[0].mxu0
        %v640 = vadd.f32 0.0, %v639
        %v641 = vpop.f32.mrb[0].mxu0
        %642 = vmatprep.mubr.f32.mxu0 0.0
        %643 = vmatmul.mubr.f32.gmra.mrb[0].mxu0 %v542
        %v644 = vpop.f32.mrb[0].mxu0
        %v645 = vadd.f32 0.0, %v644
        %v646 = vpop.f32.mrb[0].mxu0
        %647 = vmatprep.mubr.f32.mxu0 0.0
        %648 = vmatmul.mubr.f32.gmra.mrb[0].mxu0 %v545
        %v649 = vpop.f32.mrb[0].mxu0
        %v650 = vadd.f32 0.0, %v649
        %v651 = vpop.f32.mrb[0].mxu0
        %652 = vmatprep.mubr.f32.mxu0 0.0
        %653 = vmatmul.mubr.f32.gmra.mrb[0].mxu0 %v548
        %v654 = vpop.f32.mrb[0].mxu0
        %v655 = vadd.f32 0.0, %v654
        %v656 = vpop.f32.mrb[0].mxu0
        %657 = vdwg.mxu0
        %658 = vst [vmem:[%s166] sm:$0xff] %v620
        %659 = vst [vmem:[%s166 + $0x8] sm:$0xff] %v625
        %660 = vst [vmem:[%s166 + $0x10] sm:$0xff] %v630
        %661 = vst [vmem:[%s166 + $0x18] sm:$0xff] %v635
        %662 = vst [vmem:[%s166 + $0x20] sm:$0xff] %v640
        %663 = vst [vmem:[%s166 + $0x28] sm:$0xff] %v645
        %664 = vst [vmem:[%s166 + $0x30] sm:$0xff] %v650
        %665 = vst [vmem:[%s166 + $0x38] sm:$0xff] %v655
        %s666 = sand.u32 %s93, 1
        %s667 = scalar_lea.sflag [#allocation4], %s666
        %s668 = sand.u32 %s93, 1
        %s669 = smul.addr %s668, 64
        %s670 = scalar_lea.vmem [#allocation3], %s669
        // Predicated region
        $region33: #{tpu_custom_call.1} parent=31 // pred_check
          %p671 = pneg %p103
        $region34: #{tpu_custom_call.1} parent=31 // pred_check_branch
          %673 = sbr.rel (%p671) target = $region36
        $region35: #{tpu_custom_call.1} parent=31 // pred_region
          %s674 = smul.u32 8, %s17
          %s676 = ssub.s32 1024, 1024
          %677 = vsyncadd %s667, %s676
          %s678 = smul.addr %s674, 128
          %s679 = scalar_lea.hbm %s3, %s678
          %s680 = sshll.u32 %s670, 4
          %s681 = int_to_ptr.vmem [resolvable:$true] %s680
          %686 = dma.vmem_to_hbm [thread:$0]  %s681, 1024, %s679, %s667, 128, 128, 8
        $region36: #{tpu_custom_call.1} parent=31 // pred_fallthru
          _
      $region32: #{tpu_custom_call.1} parent=5 // pred_fallthru
        _
      %p687 = scmp.le.s32.totalorder 2, %s12
      // Predicated region
      $region37: #{tpu_custom_call.1} parent=5 // pred_check
        %p688 = pneg %p687
      $region38: #{tpu_custom_call.1} parent=5 // pred_check_branch
        %690 = sbr.rel (%p688) target = $region40
      $region39: #{tpu_custom_call.1} parent=5 // pred_region
        %s691 = ssub.s32 %s12, 2
        // Predicated region
        $region41: #{tpu_custom_call.1} parent=39 // pred_check
          %p692 = pneg %p109
        $region42: #{tpu_custom_call.1} parent=39 // pred_check_branch
          %694 = sbr.rel (%p692) target = $region44
        $region43: #{tpu_custom_call.1} parent=39 // pred_region
          %s695 = sand.u32 %s94, 1
          %s696 = scalar_lea.sflag [#allocation4], %s695
          %s697 = sand.u32 %s94, 1
          %s698 = smul.addr %s697, 64
          %s699 = scalar_lea.vmem [#allocation3], %s698
          %700 = dma.done %s696, 1024
        $region44: #{tpu_custom_call.1} parent=39 // pred_fallthru
          _
      $region40: #{tpu_custom_call.1} parent=5 // pred_fallthru
        _
    $region6: #{tpu_custom_call.1} parent=1 // loop_footer
      %s16 = sadd.s32 1, %s12
    $region7: #{tpu_custom_call.1} parent=1 // loop_footer_branch
      %11 = sbr.rel target = $region3
    $region8: #{tpu_custom_call.1} parent=1 // loop_exit
      _
    %701 = vsyncpa [#allocation4], 1
    %s702 = scalar_lea.sflag [#allocation4], 1
    %703 = vsyncpa %s702, 1

</llo_original>
